<compile_context>
chip_gen: v7x
topology: tpu7x:2x2x1
jax: 0.10.0
libtpu: 0.0.40
codegen_flags: <defaults>
</compile_context>

<pallas_src>
import jax
import jax.numpy as jnp
from jax.experimental import pallas as pl
from jax.experimental.pallas import tpu as pltpu


# ~32 MiB working set fits every generation (v7x has only 64 MiB physical
# VMEM); raise the scoped limit explicitly so double-buffering never gets
# silently dropped under v5e's small default.
_VMEM_WORKING_SET_BUDGET = 32 * 1024 * 1024
_VMEM_LIMIT_BYTES = 48 * 1024 * 1024


def _round_up(n: int, m: int) -> int:
    return ((n + m - 1) // m) * m


def _pick_batch_tile(B: int, D_pad: int, H_pad: int,
                     x_itemsize: int, w_itemsize: int) -> int:
    """VMEM-aware batch tile.

    Accounts for the double-buffered x / reward / row-sum tiles, the f32
    intermediates, and the resident weights (budgeted at 2 buffers so the
    estimate stays safe even if the single-buffering fallback is taken).
    Also caps the tile so the batch grid has >=2 (>=4 when tiles stay
    MXU-sized) steps for megacore sharding and pipeline overlap.
    """
    resident = 2 * (2 * D_pad * H_pad * w_itemsize      # W1 + W2
                    + 8 * H_pad * 4 + 8 * D_pad * 4)    # b1 + b2 (sublane-padded)
    avail = max(_VMEM_WORKING_SET_BUDGET - resident, 2 * 1024 * 1024)
    per_row = (2 * D_pad * x_itemsize   # x tile, double-buffered
               + 2 * D_pad * 4          # reward tile (f32), double-buffered
               + 2 * 128 * 4            # row-sum tile (lane-padded), double-buffered
               + H_pad * 4              # h intermediate (f32)
               + D_pad * 4)             # f32 reward before store
    tb = int(avail // per_row)
    tb = min(tb, 512)                   # diminishing returns past 512 rows

    if B > 8:
        half = _round_up(-(-B // 2), 8)
        quarter = _round_up(-(-B // 4), 8)
        target = quarter if quarter >= 128 else half    # >=4 steps if tiles stay big
        tb = min(tb, target)

    tb = max(8, (tb // 8) * 8)          # sublane-aligned
    tb = min(tb, _round_up(B, 8))       # never bigger than the (padded) batch
    return tb


def _reward_kernel(x_ref, w1_ref, b1_ref, w2_ref, b2_ref, rp_ref, rowsum_ref):
    """r = tanh(x @ W1 + b1) @ W2 + b2, plus per-row sums for the fused mean."""
    cdt = w1_ref.dtype                      # compute dtype (f32 or bf16)
    x = x_ref[...].astype(cdt)              # cast in vregs -> bf16 MXU path
    h = jnp.tanh(
        jnp.dot(x, w1_ref[...], preferred_element_type=jnp.float32)
        + b1_ref[...])
    rp = (jnp.dot(h.astype(cdt), w2_ref[...], preferred_element_type=jnp.float32)
          + b2_ref[...])
    rp_ref[...] = rp.astype(rp_ref.dtype)
    # Fused mean: per-row sums (padded columns are exactly 0 -> no bias).
    rowsum_ref[...] = jnp.sum(rp, axis=-1, keepdims=True).astype(rowsum_ref.dtype)


def prepare_reward_params(params, compute_dtype=jnp.float32):
    """One-time (out of the hot path) padding of D and H to lane-dense
    multiples of 128 and optional bf16 cast of the weight matrices."""
    w1, b1, w2, b2 = params["w1"], params["b1"], params["w2"], params["b2"]
    D, H = w1.shape
    D_pad = _round_up(D, 128)
    H_pad = _round_up(H, 128)
    w1p = jnp.pad(w1, ((0, D_pad - D), (0, H_pad - H))).astype(compute_dtype)
    w2p = jnp.pad(w2, ((0, H_pad - H), (0, D_pad - D))).astype(compute_dtype)
    b1p = jnp.pad(b1.reshape(1, H), ((0, 0), (0, H_pad - H))).astype(jnp.float32)
    b2p = jnp.pad(b2.reshape(1, D), ((0, 0), (0, D_pad - D))).astype(jnp.float32)
    return dict(w1=w1p, b1=b1p, w2=w2p, b2=b2p, D=D, H=H, D_pad=D_pad, H_pad=H_pad)


def reward_model_with_uncertainty_forward(x, prepared, uncertainty_scale=0.5):
    """Forward pass of RewardModelWithUncertainty (dynamic_factor=None path)."""
    B, D = x.shape
    assert D == prepared["D"], "x feature dim does not match prepared params"
    D_pad, H_pad = prepared["D_pad"], prepared["H_pad"]

    if D_pad != D:
        # Lane-dense loads/stores; padded columns are a mathematical no-op.
        x = jnp.pad(x, ((0, 0), (0, D_pad - D)))

    w1, b1, w2, b2 = prepared["w1"], prepared["b1"], prepared["w2"], prepared["b2"]
    TB = _pick_batch_tile(B, D_pad, H_pad,
                          x_itemsize=x.dtype.itemsize,
                          w_itemsize=w1.dtype.itemsize)
    grid = (pl.cdiv(B, TB),)

    def run(single_buffer_weights):
        if single_buffer_weights:
            # Constant index_map + single buffer: weights stay VMEM-resident
            # with half the allocation of the default double-buffering.
            def const(shape):
                return pl.BlockSpec(shape, lambda i: (0, 0),
                                    pipeline_mode=pl.Buffered(1))
        else:
            def const(shape):
                return pl.BlockSpec(shape, lambda i: (0, 0))
        return pl.pallas_call(
            _reward_kernel,
            out_shape=(
                jax.ShapeDtypeStruct((B, D_pad), jnp.float32),  # reward map
                jax.ShapeDtypeStruct((B, 1), jnp.float32),      # per-row sums
            ),
            grid_spec=pltpu.PrefetchScalarGridSpec(
                num_scalar_prefetch=0,
                grid=grid,
                in_specs=[
                    pl.BlockSpec((TB, D_pad), lambda i: (i, 0)),   # x tile
                    const((D_pad, H_pad)),                         # W1 (resident)
                    const((1, H_pad)),                             # b1
                    const((H_pad, D_pad)),                         # W2 (resident)
                    const((1, D_pad)),                             # b2
                ],
                out_specs=[
                    pl.BlockSpec((TB, D_pad), lambda i: (i, 0)),   # reward map
                    pl.BlockSpec((TB, 1), lambda i: (i, 0)),       # row sums
                ],
            ),
            compiler_params=pltpu.CompilerParams(
                dimension_semantics=("parallel",),
                vmem_limit_bytes=_VMEM_LIMIT_BYTES,
            ),
        )(x, w1, b1, w2, b2)

    try:
        rp2d, row_sums = run(True)
    except Exception:
        # pipeline_mode=pl.Buffered(1) not supported by this Pallas build;
        # fall back to default (double-buffered) weight specs.
        rp2d, row_sums = run(False)

    if D_pad != D:
        rp2d = rp2d[:, :D]

    reward_unpenalized = rp2d[..., None]          # [B, D, 1]
    # uncertainty is statically zero on this path => reward == reward_unpenalized
    reward = reward_unpenalized

    # TODO(synk): TensorDict(batch_size=x.shape) has no Pallas/JAX equivalent;
    # a plain dict holding the same tensors is returned instead.
    tensordict = dict(reward=reward, reward_unpenalized=reward_unpenalized)

    # Mean fused into the kernel (per-row sums); padded columns contribute
    # exactly 0, so dividing by the true B*D gives the module's reward.mean().
    # Lazy device scalar (no .item()/float() host sync in the hot path).
    reward_mean = jnp.sum(row_sums) / (B * D)
    info = dict(
        uncertainty=0.0,                              # identically zero
        uncertainty_scale=float(uncertainty_scale),   # python attribute
        reward=reward_mean,
        reward_unpenalized=reward_mean,
    )
    return tensordict, info


def _init_params(key, D, H):
    k1, k2, k3, k4 = jax.random.split(key, 4)
    return dict(
        w1=(jax.random.normal(k1, (D, H), jnp.float32) / jnp.sqrt(D)),
        b1=0.01 * jax.random.normal(k2, (1, H), jnp.float32),
        w2=(jax.random.normal(k3, (H, D), jnp.float32) / jnp.sqrt(H)),
        b2=0.01 * jax.random.normal(k4, (1, D), jnp.float32),
    )


def _reference_forward(x, params, uncertainty_scale):
    h = jnp.tanh(x @ params["w1"] + params["b1"])
    rp = (h @ params["w2"] + params["b2"])[..., None]
    unc = jnp.zeros(x.shape + (1,), rp.dtype)
    unc_red = unc.mean(axis=-1, keepdims=True)
    return rp, rp - uncertainty_scale * unc_red


if __name__ == "__main__":
    key = jax.random.PRNGKey(0)
    kx, kp = jax.random.split(key)

    # Small demo shapes: B=12 is deliberately not tile-aligned so the
    # cdiv-grid + masked final partial block path is exercised (no pad/slice).
    B, D, H = 12, 128, 64
    x = jax.random.normal(kx, (B, D), jnp.float32)
    raw_params = _init_params(kp, D, H)
    uncertainty_scale = 0.5

    rp_ref, r_ref = _reference_forward(x, raw_params, uncertainty_scale)

    # ---- f32 path: exact match against the pure-JAX reference --------------
    p32 = prepare_reward_params(raw_params, compute_dtype=jnp.float32)
    td, info = reward_model_with_uncertainty_forward(
        x, p32, uncertainty_scale=uncertainty_scale)
    jax.block_until_ready(td["reward"])
    jax.block_until_ready(td["reward_unpenalized"])

    assert td["reward"].shape == (B, D, 1)
    assert td["reward_unpenalized"].shape == (B, D, 1)
    assert jnp.allclose(td["reward_unpenalized"], rp_ref, atol=1e-5, rtol=1e-5)
    assert jnp.allclose(td["reward"], r_ref, atol=1e-5, rtol=1e-5)
    assert jnp.allclose(info["reward"], jnp.mean(rp_ref), atol=1e-4, rtol=1e-4)
    assert float(info["uncertainty"]) == 0.0

    # ---- bf16-weight path (v5e/v6e/v7x byte-reduction / bf16 MXU) ----------
    pbf16 = prepare_reward_params(raw_params, compute_dtype=jnp.bfloat16)
    td16, info16 = reward_model_with_uncertainty_forward(
        x, pbf16, uncertainty_scale=uncertainty_scale)
    jax.block_until_ready(td16["reward"])
    assert td16["reward"].shape == (B, D, 1)
    assert jnp.allclose(td16["reward_unpenalized"], rp_ref, atol=5e-2, rtol=5e-2)
    assert jnp.allclose(info16["reward"], jnp.mean(rp_ref), atol=5e-2, rtol=5e-2)

    print("KERNEL_OK")
</pallas_src>

<mosaic_0001>
module attributes {stable_mosaic.version = 11 : i64} {
  func.func @_reward_kernel(%arg0: i32, %arg1: memref<8x128xf32, #tpu.memory_space<vmem>>, %arg2: memref<128x128xf32, #tpu.memory_space<vmem>>, %arg3: memref<1x128xf32, #tpu.memory_space<vmem>>, %arg4: memref<128x128xf32, #tpu.memory_space<vmem>>, %arg5: memref<1x128xf32, #tpu.memory_space<vmem>>, %arg6: memref<8x128xf32, #tpu.memory_space<vmem>>, %arg7: memref<8x1xf32, #tpu.memory_space<vmem>>) attributes {dimension_semantics = [#tpu.dimension_semantics<parallel>], iteration_bounds = array<i64: 2>, scalar_prefetch = 0 : i64, scratch_operands = 0 : i64, tpu.core_type = #tpu.core_type<tc>, window_params = [{transform_indices = @transform_0, window_bounds = array<i64: 8, 128>}, {pipeline_mode = #tpu.pipeline_mode<synchronous>, transform_indices = @transform_1, window_bounds = array<i64: 128, 128>}, {pipeline_mode = #tpu.pipeline_mode<synchronous>, transform_indices = @transform_2, window_bounds = array<i64: 1, 128>}, {pipeline_mode = #tpu.pipeline_mode<synchronous>, transform_indices = @transform_3, window_bounds = array<i64: 128, 128>}, {pipeline_mode = #tpu.pipeline_mode<synchronous>, transform_indices = @transform_4, window_bounds = array<i64: 1, 128>}, {transform_indices = @transform_5, window_bounds = array<i64: 8, 128>}, {transform_indices = @transform_6, window_bounds = array<i64: 8, 1>}]} {
    %c0 = arith.constant 0 : index
    %c0_0 = arith.constant 0 : index
    %0 = vector.load %arg1[%c0, %c0_0] : memref<8x128xf32, #tpu.memory_space<vmem>>, vector<8x128xf32>
    %c0_1 = arith.constant 0 : index
    %c0_2 = arith.constant 0 : index
    %1 = vector.load %arg2[%c0_1, %c0_2] : memref<128x128xf32, #tpu.memory_space<vmem>>, vector<128x128xf32>
    %cst = arith.constant dense<0.000000e+00> : vector<8x128xf32>
    %2 = tpu.matmul %0, %1, %cst {dimension_numbers = #tpu.dot_dimension_numbers<[1], [0], [0], [1], [0, 0, 1, 1], [], []>} : vector<8x128xf32>, vector<128x128xf32>, vector<8x128xf32> -> vector<8x128xf32>
    %c0_3 = arith.constant 0 : index
    %c0_4 = arith.constant 0 : index
    %3 = vector.load %arg3[%c0_3, %c0_4] : memref<1x128xf32, #tpu.memory_space<vmem>>, vector<1x128xf32>
    %4 = vector.broadcast %3 : vector<1x128xf32> to vector<8x128xf32>
    %5 = arith.addf %2, %4 : vector<8x128xf32>
    %6 = math.tanh %5 : vector<8x128xf32>
    %c0_5 = arith.constant 0 : index
    %c0_6 = arith.constant 0 : index
    %7 = vector.load %arg4[%c0_5, %c0_6] : memref<128x128xf32, #tpu.memory_space<vmem>>, vector<128x128xf32>
    %cst_7 = arith.constant dense<0.000000e+00> : vector<8x128xf32>
    %8 = tpu.matmul %6, %7, %cst_7 {dimension_numbers = #tpu.dot_dimension_numbers<[1], [0], [0], [1], [0, 0, 1, 1], [], []>} : vector<8x128xf32>, vector<128x128xf32>, vector<8x128xf32> -> vector<8x128xf32>
    %c0_8 = arith.constant 0 : index
    %c0_9 = arith.constant 0 : index
    %9 = vector.load %arg5[%c0_8, %c0_9] : memref<1x128xf32, #tpu.memory_space<vmem>>, vector<1x128xf32>
    %10 = vector.broadcast %9 : vector<1x128xf32> to vector<8x128xf32>
    %11 = arith.addf %8, %10 : vector<8x128xf32>
    %c0_10 = arith.constant 0 : index
    %c0_11 = arith.constant 0 : index
    %12 = vector.load %arg6[%c0_10, %c0_11] : memref<8x128xf32, #tpu.memory_space<vmem>>, vector<8x128xf32>
    tpu.vector_store %arg6[%c0_10, %c0_11], %11 {strides = array<i32>} : memref<8x128xf32, #tpu.memory_space<vmem>>, vector<8x128xf32>,
    %cst_12 = arith.constant dense<0.000000e+00> : vector<8xf32>
    %13 = vector.multi_reduction <add>, %11, %cst_12 [1] : vector<8x128xf32> to vector<8xf32>
    %14 = vector.shape_cast %13 : vector<8xf32> to vector<8x1xf32>
    %c0_13 = arith.constant 0 : index
    %c0_14 = arith.constant 0 : index
    %15 = vector.load %arg7[%c0_13, %c0_14] : memref<8x1xf32, #tpu.memory_space<vmem>>, vector<8x1xf32>
    tpu.vector_store %arg7[%c0_13, %c0_14], %14 {strides = array<i32>} : memref<8x1xf32, #tpu.memory_space<vmem>>, vector<8x1xf32>,
    return
  }
  func.func @transform_0(%arg0: i32) -> (i32, i32) {
    %c0_i32 = arith.constant 0 : i32
    %c0_i32_0 = arith.constant 0 : i32
    return %arg0, %c0_i32 : i32, i32
  }
  func.func @transform_1(%arg0: i32) -> (i32, i32) {
    %c0_i32 = arith.constant 0 : i32
    %c0_i32_0 = arith.constant 0 : i32
    %c0_i32_1 = arith.constant 0 : i32
    return %c0_i32, %c0_i32_0 : i32, i32
  }
  func.func @transform_2(%arg0: i32) -> (i32, i32) {
    %c0_i32 = arith.constant 0 : i32
    %c0_i32_0 = arith.constant 0 : i32
    %c0_i32_1 = arith.constant 0 : i32
    return %c0_i32, %c0_i32_0 : i32, i32
  }
  func.func @transform_3(%arg0: i32) -> (i32, i32) {
    %c0_i32 = arith.constant 0 : i32
    %c0_i32_0 = arith.constant 0 : i32
    %c0_i32_1 = arith.constant 0 : i32
    return %c0_i32, %c0_i32_0 : i32, i32
  }
  func.func @transform_4(%arg0: i32) -> (i32, i32) {
    %c0_i32 = arith.constant 0 : i32
    %c0_i32_0 = arith.constant 0 : i32
    %c0_i32_1 = arith.constant 0 : i32
    return %c0_i32, %c0_i32_0 : i32, i32
  }
  func.func @transform_5(%arg0: i32) -> (i32, i32) {
    %c0_i32 = arith.constant 0 : i32
    %c0_i32_0 = arith.constant 0 : i32
    return %arg0, %c0_i32 : i32, i32
  }
  func.func @transform_6(%arg0: i32) -> (i32, i32) {
    %c0_i32 = arith.constant 0 : i32
    %c0_i32_0 = arith.constant 0 : i32
    return %arg0, %c0_i32 : i32, i32
  }
}

module attributes {stable_mosaic.version = 11 : i64} {
  func.func @_reward_kernel(%arg0: i32, %arg1: memref<8x128xf32, #tpu.memory_space<vmem>>, %arg2: memref<128x128xf32, #tpu.memory_space<vmem>>, %arg3: memref<1x128xf32, #tpu.memory_space<vmem>>, %arg4: memref<128x128xf32, #tpu.memory_space<vmem>>, %arg5: memref<1x128xf32, #tpu.memory_space<vmem>>, %arg6: memref<8x128xf32, #tpu.memory_space<vmem>>, %arg7: memref<8x1xf32, #tpu.memory_space<vmem>>) attributes {dimension_semantics = [#tpu.dimension_semantics<parallel>], iteration_bounds = array<i64: 2>, scalar_prefetch = 0 : i64, scratch_operands = 0 : i64, tpu.core_type = #tpu.core_type<tc>, window_params = [{transform_indices = @transform_0, window_bounds = array<i64: 8, 128>}, {pipeline_mode = #tpu.pipeline_mode<synchronous>, transform_indices = @transform_1, window_bounds = array<i64: 128, 128>}, {pipeline_mode = #tpu.pipeline_mode<synchronous>, transform_indices = @transform_2, window_bounds = array<i64: 1, 128>}, {pipeline_mode = #tpu.pipeline_mode<synchronous>, transform_indices = @transform_3, window_bounds = array<i64: 128, 128>}, {pipeline_mode = #tpu.pipeline_mode<synchronous>, transform_indices = @transform_4, window_bounds = array<i64: 1, 128>}, {transform_indices = @transform_5, window_bounds = array<i64: 8, 128>}, {transform_indices = @transform_6, window_bounds = array<i64: 8, 1>}]} {
    %c0 = arith.constant 0 : index
    %c0_0 = arith.constant 0 : index
    %0 = vector.load %arg1[%c0, %c0_0] : memref<8x128xf32, #tpu.memory_space<vmem>>, vector<8x128xf32>
    %c0_1 = arith.constant 0 : index
    %c0_2 = arith.constant 0 : index
    %1 = vector.load %arg2[%c0_1, %c0_2] : memref<128x128xf32, #tpu.memory_space<vmem>>, vector<128x128xf32>
    %cst = arith.constant dense<0.000000e+00> : vector<8x128xf32>
    %2 = tpu.matmul %0, %1, %cst {dimension_numbers = #tpu.dot_dimension_numbers<[1], [0], [0], [1], [0, 0, 1, 1], [], []>} : vector<8x128xf32>, vector<128x128xf32>, vector<8x128xf32> -> vector<8x128xf32>
    %c0_3 = arith.constant 0 : index
    %c0_4 = arith.constant 0 : index
    %3 = vector.load %arg3[%c0_3, %c0_4] : memref<1x128xf32, #tpu.memory_space<vmem>>, vector<1x128xf32>
    %4 = vector.broadcast %3 : vector<1x128xf32> to vector<8x128xf32>
    %5 = arith.addf %2, %4 : vector<8x128xf32>
    %6 = math.tanh %5 : vector<8x128xf32>
    %c0_5 = arith.constant 0 : index
    %c0_6 = arith.constant 0 : index
    %7 = vector.load %arg4[%c0_5, %c0_6] : memref<128x128xf32, #tpu.memory_space<vmem>>, vector<128x128xf32>
    %cst_7 = arith.constant dense<0.000000e+00> : vector<8x128xf32>
    %8 = tpu.matmul %6, %7, %cst_7 {dimension_numbers = #tpu.dot_dimension_numbers<[1], [0], [0], [1], [0, 0, 1, 1], [], []>} : vector<8x128xf32>, vector<128x128xf32>, vector<8x128xf32> -> vector<8x128xf32>
    %c0_8 = arith.constant 0 : index
    %c0_9 = arith.constant 0 : index
    %9 = vector.load %arg5[%c0_8, %c0_9] : memref<1x128xf32, #tpu.memory_space<vmem>>, vector<1x128xf32>
    %10 = vector.broadcast %9 : vector<1x128xf32> to vector<8x128xf32>
    %11 = arith.addf %8, %10 : vector<8x128xf32>
    %c0_10 = arith.constant 0 : index
    %c0_11 = arith.constant 0 : index
    %12 = vector.load %arg6[%c0_10, %c0_11] : memref<8x128xf32, #tpu.memory_space<vmem>>, vector<8x128xf32>
    tpu.vector_store %arg6[%c0_10, %c0_11], %11 {strides = array<i32>} : memref<8x128xf32, #tpu.memory_space<vmem>>, vector<8x128xf32>,
    %cst_12 = arith.constant dense<0.000000e+00> : vector<8xf32>
    %13 = vector.multi_reduction <add>, %11, %cst_12 [1] : vector<8x128xf32> to vector<8xf32>
    %14 = vector.shape_cast %13 : vector<8xf32> to vector<8x1xf32>
    %c0_13 = arith.constant 0 : index
    %c0_14 = arith.constant 0 : index
    %15 = vector.load %arg7[%c0_13, %c0_14] : memref<8x1xf32, #tpu.memory_space<vmem>>, vector<8x1xf32>
    tpu.vector_store %arg7[%c0_13, %c0_14], %14 {strides = array<i32>} : memref<8x1xf32, #tpu.memory_space<vmem>>, vector<8x1xf32>,
    return
  }
  func.func @transform_0(%arg0: i32) -> (i32, i32) {
    %c0_i32 = arith.constant 0 : i32
    %c0_i32_0 = arith.constant 0 : i32
    return %arg0, %c0_i32 : i32, i32
  }
  func.func @transform_1(%arg0: i32) -> (i32, i32) {
    %c0_i32 = arith.constant 0 : i32
    %c0_i32_0 = arith.constant 0 : i32
    %c0_i32_1 = arith.constant 0 : i32
    return %c0_i32, %c0_i32_0 : i32, i32
  }
  func.func @transform_2(%arg0: i32) -> (i32, i32) {
    %c0_i32 = arith.constant 0 : i32
    %c0_i32_0 = arith.constant 0 : i32
    %c0_i32_1 = arith.constant 0 : i32
    return %c0_i32, %c0_i32_0 : i32, i32
  }
  func.func @transform_3(%arg0: i32) -> (i32, i32) {
    %c0_i32 = arith.constant 0 : i32
    %c0_i32_0 = arith.constant 0 : i32
    %c0_i32_1 = arith.constant 0 : i32
    return %c0_i32, %c0_i32_0 : i32, i32
  }
  func.func @transform_4(%arg0: i32) -> (i32, i32) {
    %c0_i32 = arith.constant 0 : i32
    %c0_i32_0 = arith.constant 0 : i32
    %c0_i32_1 = arith.constant 0 : i32
    return %c0_i32, %c0_i32_0 : i32, i32
  }
  func.func @transform_5(%arg0: i32) -> (i32, i32) {
    %c0_i32 = arith.constant 0 : i32
    %c0_i32_0 = arith.constant 0 : i32
    return %arg0, %c0_i32 : i32, i32
  }
  func.func @transform_6(%arg0: i32) -> (i32, i32) {
    %c0_i32 = arith.constant 0 : i32
    %c0_i32_0 = arith.constant 0 : i32
    return %arg0, %c0_i32 : i32, i32
  }
}

</mosaic_0001>

<llo_original>
// kernel: tpu_custom_call.1
$region0: #{tpu_custom_call.1}
  #allocation0 [shape = 'u32[]', space=smem, size = 0x4, offset = 0x4, fixed_abs, tag = 'smem constant byte address 0x4 - core index']
  #allocation1 [shape = 'u32[144,128]{1,0:T(1,128)}', space=vmem, size = 0x12000, scoped, tag = 'internal scratch']
  %s0 = inlined_call_operand.hbm [shape: f32[12,128], index: 0, kind: input, shape index: {}]
  %s1 = inlined_call_operand.hbm [shape: f32[128,128], index: 1, kind: input, shape index: {}]
  %s2 = inlined_call_operand.vmem [shape: f32[1,128], index: 2, kind: input, shape index: {}]
  %s3 = inlined_call_operand.hbm [shape: f32[128,128], index: 3, kind: input, shape index: {}]
  %s4 = inlined_call_operand.vmem [shape: f32[1,128], index: 4, kind: input, shape index: {}]
  %s5 = inlined_call_operand.hbm [shape: f32[12,128], index: 5, kind: output, shape index: {0}]
  %s6 = inlined_call_operand.vmem [shape: f32[12,1], index: 6, kind: output, shape index: {1}]
  %7 = xla_tuple %s5, %s6
  %s8 = sld [smem:[#allocation0]]
  $region73: #{tpu_custom_call.1} parent=0
    _
  %s10 = ssub.s32 1, %s8
  %s11 = scalar_select 0, %s10, %s8
  $region1: #{tpu_custom_call.1} parent=0
    #allocation2 [shape = 'u8[8192]{0}', space=vmem, size = 0x2000, scoped, tag = 'input window, operand 0']
    #allocation3 [shape = 's32[2]{0}', space=sflag, size = 0x8, scoped, tag = 'scoped memory for tpu_custom_call.1']
    #allocation4 [shape = 's32[2]{0}', space=sflag, size = 0x8, scoped, tag = 'scoped memory for tpu_custom_call.1']
    #allocation5 [shape = 'u8[65536]{0}', space=vmem, size = 0x10000, scoped, tag = 'input window, operand 1, single buffered']
    #allocation6 [shape = 's32[1]{0}', space=sflag, size = 0x4, scoped, tag = 'scoped memory for tpu_custom_call.1']
    #allocation7 [shape = 'u8[65536]{0}', space=vmem, size = 0x10000, scoped, tag = 'input window, operand 3, single buffered']
    #allocation8 [shape = 'u8[8192]{0}', space=vmem, size = 0x2000, scoped, tag = 'output window, operand 0']
    %12 = vsyncpa [#allocation3], 0
    %s13 = scalar_lea.sflag [#allocation3], 1
    %14 = vsyncpa %s13, 0
    %15 = vsyncpa [#allocation6], 0
    %16 = vsyncpa [#allocation4], 0
    %s17 = scalar_lea.sflag [#allocation4], 1
    %18 = vsyncpa %s17, 0
    loop: start=0, step=1, limit=4
    $region2: #{tpu_custom_call.1} parent=1 // loop_pre_header
      _
    $region3: #{tpu_custom_call.1} parent=1 // loop_header
      %s20 = sphi 0, %s24
      %p21 = scmp.ge.s32.totalorder %s20, 4
      %s30 = sphi 0, %s32
      %s33 = sphi 0, %s30
      %s34 = sphi 0, %s33
      %s50 = sphi 0, %s34
      %s54 = sphi 0, %s54
      %s56 = sphi 0, %s54
      %s57 = sphi 0, %s56
      %s71 = sphi 0, %s57
      %s75 = sphi 0, %s75
      %s77 = sphi 0, %s75
      %s78 = sphi 0, %s77
      %s92 = sphi 0, %s78
      %s96 = sphi 0, %s96
      %s98 = sphi 0, %s96
      %s99 = sphi 0, %s98
      %s113 = sphi 0, %s99
      %s117 = sphi 0, %s117
      %s119 = sphi 0, %s117
      %s120 = sphi 0, %s119
      %s134 = sphi 0, %s120
      %s140 = sphi 0, %s142
      %s143 = sphi 0, %s140
      %s144 = sphi 0, %s143
      %s160 = sphi 0, %s144
      %s166 = sphi 0, %s168
      %s169 = sphi 0, %s166
      %s170 = sphi 0, %s169
      %s186 = sphi 0, %s170
    $region4: #{tpu_custom_call.1} parent=1 // loop_header_branch
      %23 = sbr.rel (%p21) target = $region8
    $region5: #{tpu_custom_call.1} parent=1 // loop_body
      %s25 = ssub.s32 %s20, 1
      %s26 = ssub.s32 %s20, 2
      %s27 = sadd.s32 %s20, 1
      %s28 = ssub.s32 %s20, %s27
      %p29 = scmp.eq.s32.totalorder %s28, 0
      %s31 = sadd.s32 %s30, 1
      %s32 = scalar_select %p29, %s30, %s31
      %p35 = pneg %p29
      %p36 = scmp.eq.s32.totalorder %s20, 1
      %p37 = por %p35, %p36
      %p38 = scmp.ne.s32.totalorder %s30, %s33
      %p39 = scmp.eq.s32.totalorder %s20, 0
      %p40 = por %p38, %p39
      %p41 = scmp.ne.s32.totalorder %s30, %s33
      %p42 = scmp.eq.s32.totalorder %s25, 1
      %p43 = por %p41, %p42
      %p44 = scmp.ne.s32.totalorder %s33, %s34
      %p45 = scmp.eq.s32.totalorder %s25, 0
      %p46 = por %p44, %p45
      %p47 = scmp.ne.s32.totalorder %s33, %s34
      %p48 = scmp.eq.s32.totalorder %s26, 1
      %p49 = por %p47, %p48
      %p51 = scmp.ne.s32.totalorder %s34, %s50
      %p52 = scmp.eq.s32.totalorder %s26, 0
      %p53 = por %p51, %p52
      %s55 = sadd.s32 %s54, 1
      %p58 = scmp.eq.s32.totalorder %s20, 1
      %p59 = scmp.ne.s32.totalorder %s54, %s56
      %p60 = scmp.eq.s32.totalorder %s20, 0
      %p61 = por %p59, %p60
      %p62 = scmp.ne.s32.totalorder %s54, %s56
      %p63 = scmp.eq.s32.totalorder %s25, 1
      %p64 = por %p62, %p63
      %p65 = scmp.ne.s32.totalorder %s56, %s57
      %p66 = scmp.eq.s32.totalorder %s25, 0
      %p67 = por %p65, %p66
      %p68 = scmp.ne.s32.totalorder %s56, %s57
      %p69 = scmp.eq.s32.totalorder %s26, 1
      %p70 = por %p68, %p69
      %p72 = scmp.ne.s32.totalorder %s57, %s71
      %p73 = scmp.eq.s32.totalorder %s26, 0
      %p74 = por %p72, %p73
      %s76 = sadd.s32 %s75, 1
      %p79 = scmp.eq.s32.totalorder %s20, 1
      %p80 = scmp.ne.s32.totalorder %s75, %s77
      %p81 = scmp.eq.s32.totalorder %s20, 0
      %p82 = por %p80, %p81
      %p83 = scmp.ne.s32.totalorder %s75, %s77
      %p84 = scmp.eq.s32.totalorder %s25, 1
      %p85 = por %p83, %p84
      %p86 = scmp.ne.s32.totalorder %s77, %s78
      %p87 = scmp.eq.s32.totalorder %s25, 0
      %p88 = por %p86, %p87
      %p89 = scmp.ne.s32.totalorder %s77, %s78
      %p90 = scmp.eq.s32.totalorder %s26, 1
      %p91 = por %p89, %p90
      %p93 = scmp.ne.s32.totalorder %s78, %s92
      %p94 = scmp.eq.s32.totalorder %s26, 0
      %p95 = por %p93, %p94
      %s97 = sadd.s32 %s96, 1
      %p100 = scmp.eq.s32.totalorder %s20, 1
      %p101 = scmp.ne.s32.totalorder %s96, %s98
      %p102 = scmp.eq.s32.totalorder %s20, 0
      %p103 = por %p101, %p102
      %p104 = scmp.ne.s32.totalorder %s96, %s98
      %p105 = scmp.eq.s32.totalorder %s25, 1
      %p106 = por %p104, %p105
      %p107 = scmp.ne.s32.totalorder %s98, %s99
      %p108 = scmp.eq.s32.totalorder %s25, 0
      %p109 = por %p107, %p108
      %p110 = scmp.ne.s32.totalorder %s98, %s99
      %p111 = scmp.eq.s32.totalorder %s26, 1
      %p112 = por %p110, %p111
      %p114 = scmp.ne.s32.totalorder %s99, %s113
      %p115 = scmp.eq.s32.totalorder %s26, 0
      %p116 = por %p114, %p115
      %s118 = sadd.s32 %s117, 1
      %p121 = scmp.eq.s32.totalorder %s20, 1
      %p122 = scmp.ne.s32.totalorder %s117, %s119
      %p123 = scmp.eq.s32.totalorder %s20, 0
      %p124 = por %p122, %p123
      %p125 = scmp.ne.s32.totalorder %s117, %s119
      %p126 = scmp.eq.s32.totalorder %s25, 1
      %p127 = por %p125, %p126
      %p128 = scmp.ne.s32.totalorder %s119, %s120
      %p129 = scmp.eq.s32.totalorder %s25, 0
      %p130 = por %p128, %p129
      %p131 = scmp.ne.s32.totalorder %s119, %s120
      %p132 = scmp.eq.s32.totalorder %s26, 1
      %p133 = por %p131, %p132
      %p135 = scmp.ne.s32.totalorder %s120, %s134
      %p136 = scmp.eq.s32.totalorder %s26, 0
      %p137 = por %p135, %p136
      %s138 = ssub.s32 %s20, %s27
      %p139 = scmp.eq.s32.totalorder %s138, 0
      %s141 = sadd.s32 %s140, 1
      %s142 = scalar_select %p139, %s140, %s141
      %p145 = pneg %p139
      %p146 = scmp.eq.s32.totalorder %s20, 1
      %p147 = por %p145, %p146
      %p148 = scmp.ne.s32.totalorder %s140, %s143
      %p149 = scmp.eq.s32.totalorder %s20, 0
      %p150 = por %p148, %p149
      %p151 = scmp.ne.s32.totalorder %s140, %s143
      %p152 = scmp.eq.s32.totalorder %s25, 1
      %p153 = por %p151, %p152
      %p154 = scmp.ne.s32.totalorder %s143, %s144
      %p155 = scmp.eq.s32.totalorder %s25, 0
      %p156 = por %p154, %p155
      %p157 = scmp.ne.s32.totalorder %s143, %s144
      %p158 = scmp.eq.s32.totalorder %s26, 1
      %p159 = por %p157, %p158
      %p161 = scmp.ne.s32.totalorder %s144, %s160
      %p162 = scmp.eq.s32.totalorder %s26, 0
      %p163 = por %p161, %p162
      %s164 = ssub.s32 %s20, %s27
      %p165 = scmp.eq.s32.totalorder %s164, 0
      %s167 = sadd.s32 %s166, 1
      %s168 = scalar_select %p165, %s166, %s167
      %p171 = pneg %p165
      %p172 = scmp.eq.s32.totalorder %s20, 1
      %p173 = por %p171, %p172
      %p174 = scmp.ne.s32.totalorder %s166, %s169
      %p175 = scmp.eq.s32.totalorder %s20, 0
      %p176 = por %p174, %p175
      %p177 = scmp.ne.s32.totalorder %s166, %s169
      %p178 = scmp.eq.s32.totalorder %s25, 1
      %p179 = por %p177, %p178
      %p180 = scmp.ne.s32.totalorder %s169, %s170
      %p181 = scmp.eq.s32.totalorder %s25, 0
      %p182 = por %p180, %p181
      %p183 = scmp.ne.s32.totalorder %s169, %s170
      %p184 = scmp.eq.s32.totalorder %s26, 1
      %p185 = por %p183, %p184
      %p187 = scmp.ne.s32.totalorder %s170, %s186
      %p188 = scmp.eq.s32.totalorder %s26, 0
      %p189 = por %p187, %p188
      %p190 = scmp.le.s32.totalorder 1, %s20
      %p191 = scmp.lt.s32.totalorder %s20, 3
      %p192 = pnand %p190, %p191
      %p193 = pneg %p192
      // Predicated region
      $region9: #{tpu_custom_call.1} parent=5 // pred_check
        _
      $region10: #{tpu_custom_call.1} parent=5 // pred_check_branch
        %195 = sbr.rel (%p192) target = $region12
      $region11: #{tpu_custom_call.1} parent=5 // pred_region
        %s196 = ssub.s32 %s20, 1
        // Predicated region
        $region13: #{tpu_custom_call.1} parent=11 // pred_check
          %p197 = pneg %p67
        $region14: #{tpu_custom_call.1} parent=11 // pred_check_branch
          %199 = sbr.rel (%p197) target = $region16
        $region15: #{tpu_custom_call.1} parent=11 // pred_region
          %s201 = ssub.s32 2048, 2048
          %202 = vsyncadd [#allocation6], %s201
          %s203 = sshll.u32 [#allocation5], 4
          %s204 = int_to_ptr.vmem [resolvable:$true] %s203
          %209 = dma.hbm_to_vmem [thread:$0]  %s1, 2048, %s204, [#allocation6], 128, 128, 8
        $region16: #{tpu_custom_call.1} parent=11 // pred_fallthru
          _
        // Predicated region
        $region17: #{tpu_custom_call.1} parent=11 // pred_check
          %p210 = pneg %p88
        $region18: #{tpu_custom_call.1} parent=11 // pred_check_branch
          %212 = sbr.rel (%p210) target = $region20
        $region19: #{tpu_custom_call.1} parent=11 // pred_region
          _
        $region20: #{tpu_custom_call.1} parent=11 // pred_fallthru
          _
        // Predicated region
        $region21: #{tpu_custom_call.1} parent=11 // pred_check
          %p213 = pneg %p109
        $region22: #{tpu_custom_call.1} parent=11 // pred_check_branch
          %215 = sbr.rel (%p213) target = $region24
        $region23: #{tpu_custom_call.1} parent=11 // pred_region
          %s217 = ssub.s32 2048, 2048
          %218 = vsyncadd [#allocation6], %s217
          %s219 = sshll.u32 [#allocation7], 4
          %s220 = int_to_ptr.vmem [resolvable:$true] %s219
          %225 = dma.hbm_to_vmem [thread:$0]  %s3, 2048, %s220, [#allocation6], 128, 128, 8
        $region24: #{tpu_custom_call.1} parent=11 // pred_fallthru
          _
        // Predicated region
        $region25: #{tpu_custom_call.1} parent=11 // pred_check
          %p226 = pneg %p130
        $region26: #{tpu_custom_call.1} parent=11 // pred_check_branch
          %228 = sbr.rel (%p226) target = $region28
        $region27: #{tpu_custom_call.1} parent=11 // pred_region
          _
        $region28: #{tpu_custom_call.1} parent=11 // pred_fallthru
          _
      $region12: #{tpu_custom_call.1} parent=5 // pred_fallthru
        _
      %p229 = scmp.lt.s32.totalorder %s20, 2
      // Predicated region
      $region29: #{tpu_custom_call.1} parent=5 // pred_check
        %p230 = pneg %p229
      $region30: #{tpu_custom_call.1} parent=5 // pred_check_branch
        %232 = sbr.rel (%p230) target = $region32
      $region31: #{tpu_custom_call.1} parent=5 // pred_region
        // Predicated region
        $region33: #{tpu_custom_call.1} parent=31 // pred_check
          %p233 = pneg %p40
        $region34: #{tpu_custom_call.1} parent=31 // pred_check_branch
          %235 = sbr.rel (%p233) target = $region36
        $region35: #{tpu_custom_call.1} parent=31 // pred_region
          %s236 = sand.u32 %s30, 1
          %s237 = scalar_lea.sflag [#allocation3], %s236
          %s238 = sand.u32 %s30, 1
          %s239 = smul.addr %s238, 8
          %s240 = scalar_lea.vmem [#allocation2], %s239
          %s242 = ssub.s32 128, 128
          %243 = vsyncadd %s237, %s242
          %s244 = smul.addr %s20, 128
          %s245 = scalar_lea.hbm %s0, %s244
          %s247 = sshll.u32 %s240, 4
          %s248 = int_to_ptr.vmem [resolvable:$true] %s247
          %250 = dma.hbm_to_vmem [thread:$0]  %s245, 128, %s248, %s237
        $region36: #{tpu_custom_call.1} parent=31 // pred_fallthru
          _
      $region32: #{tpu_custom_call.1} parent=5 // pred_fallthru
        _
      %p251 = scmp.le.s32.totalorder 1, %s20
      %p252 = scmp.lt.s32.totalorder %s20, 3
      %p253 = pnand %p251, %p252
      %p254 = pneg %p253
      // Predicated region
      $region37: #{tpu_custom_call.1} parent=5 // pred_check
        _
      $region38: #{tpu_custom_call.1} parent=5 // pred_check_branch
        %256 = sbr.rel (%p253) target = $region40
      $region39: #{tpu_custom_call.1} parent=5 // pred_region
        %s257 = ssub.s32 %s20, 1
        %s258 = sand.u32 %s33, 1
        %s259 = scalar_lea.sflag [#allocation3], %s258
        %s260 = sand.u32 %s33, 1
        %s261 = smul.addr %s260, 8
        %s262 = scalar_lea.vmem [#allocation2], %s261
        // Predicated region
        $region41: #{tpu_custom_call.1} parent=39 // pred_check
          %p263 = pneg %p46
        $region42: #{tpu_custom_call.1} parent=39 // pred_check_branch
          %265 = sbr.rel (%p263) target = $region44
        $region43: #{tpu_custom_call.1} parent=39 // pred_region
          %266 = dma.done %s259, 128
        $region44: #{tpu_custom_call.1} parent=39 // pred_fallthru
          _
        // Predicated region
        $region45: #{tpu_custom_call.1} parent=39 // pred_check
          %p267 = pneg %p67
        $region46: #{tpu_custom_call.1} parent=39 // pred_check_branch
          %269 = sbr.rel (%p267) target = $region48
        $region47: #{tpu_custom_call.1} parent=39 // pred_region
          %270 = dma.done [#allocation6], 2048
        $region48: #{tpu_custom_call.1} parent=39 // pred_fallthru
          _
        // Predicated region
        $region49: #{tpu_custom_call.1} parent=39 // pred_check
          %p271 = pneg %p109
        $region50: #{tpu_custom_call.1} parent=39 // pred_check_branch
          %273 = sbr.rel (%p271) target = $region52
        $region51: #{tpu_custom_call.1} parent=39 // pred_region
          %274 = dma.done [#allocation6], 2048
        $region52: #{tpu_custom_call.1} parent=39 // pred_fallthru
          _
        %s275 = sand.u32 %s33, 1
        %s276 = scalar_lea.sflag [#allocation3], %s275
        %s277 = sand.u32 %s33, 1
        %s278 = smul.addr %s277, 8
        %s279 = scalar_lea.vmem [#allocation2], %s278
        %p280 = pneg %p46
        %p281 = pneg %p43
        %p282 = pneg %p67
        %p283 = pneg %p64
        %p284 = pneg %p88
        %p285 = pneg %p85
        %p286 = pneg %p109
        %p287 = pneg %p106
        %p288 = pneg %p130
        %p289 = pneg %p127
        %p290 = pneg %p156
        %p291 = pneg %p153
        %s292 = sand.u32 %s143, 1
        %s293 = scalar_lea.sflag [#allocation4], %s292
        %s294 = sand.u32 %s143, 1
        %s295 = smul.addr %s294, 8
        %s296 = scalar_lea.vmem [#allocation8], %s295
        %p297 = pneg %p182
        %p298 = pneg %p179
        %p299 = scmp.lt.s32.totalorder %s25, 1
        %s300 = scalar_select %p299, %s25, 1
        %s301 = smul.addr %s300, 8
        %s302 = scalar_lea.vmem %s6, %s301
        %p303 = scmp.lt.s32.totalorder %s25, 1
        %s304 = scalar_select %p303, %s25, 1
        %s305 = smul.addr %s304, 8
        %s306 = scalar_lea.vmem %s6, %s305
        %v307 = vld [vmem:[%s262] sm:$0xff]
        %v308 = vld [vmem:[#allocation5] sm:$0xff]
        %v309 = vld [vmem:[#allocation5 + $0x8] sm:$0xff]
        %v310 = vld [vmem:[#allocation5 + $0x10] sm:$0xff]
        %v311 = vld [vmem:[#allocation5 + $0x18] sm:$0xff]
        %v312 = vld [vmem:[#allocation5 + $0x20] sm:$0xff]
        %v313 = vld [vmem:[#allocation5 + $0x28] sm:$0xff]
        %v314 = vld [vmem:[#allocation5 + $0x30] sm:$0xff]
        %v315 = vld [vmem:[#allocation5 + $0x38] sm:$0xff]
        %v316 = vld [vmem:[#allocation5 + $0x40] sm:$0xff]
        %v317 = vld [vmem:[#allocation5 + $0x48] sm:$0xff]
        %v318 = vld [vmem:[#allocation5 + $0x50] sm:$0xff]
        %v319 = vld [vmem:[#allocation5 + $0x58] sm:$0xff]
        %v320 = vld [vmem:[#allocation5 + $0x60] sm:$0xff]
        %v321 = vld [vmem:[#allocation5 + $0x68] sm:$0xff]
        %v322 = vld [vmem:[#allocation5 + $0x70] sm:$0xff]
        %v323 = vld [vmem:[#allocation5 + $0x78] sm:$0xff]
        %v324 = vld [vmem:[%s2] sm:$0x1]
        %v326 = vlaneseq
        %v327 = vshrl.u32 %v326, 7
        %v328 = vsub.s32 0, %v327
        %v329 = vrot.slane %v324, %v328
        %331 = vmatprep.subr.mxu0 0.0
        %332 = vmatpush1.msra.mxu0 %v308
        %333 = vmatprep.subr.mxu0 0.0
        %334 = vmatpush1.msra.mxu0 %v309
        %335 = vmatprep.subr.mxu0 0.0
        %336 = vmatpush1.msra.mxu0 %v310
        %337 = vmatprep.subr.mxu0 0.0
        %338 = vmatpush1.msra.mxu0 %v311
        %339 = vmatprep.subr.mxu0 0.0
        %340 = vmatpush1.msra.mxu0 %v312
        %341 = vmatprep.subr.mxu0 0.0
        %342 = vmatpush1.msra.mxu0 %v313
        %343 = vmatprep.subr.mxu0 0.0
        %344 = vmatpush1.msra.mxu0 %v314
        %345 = vmatprep.subr.mxu0 0.0
        %346 = vmatpush1.msra.mxu0 %v315
        %347 = vmatprep.subr.mxu0 0.0
        %348 = vmatpush1.msra.mxu0 %v316
        %349 = vmatprep.subr.mxu0 0.0
        %350 = vmatpush1.msra.mxu0 %v317
        %351 = vmatprep.subr.mxu0 0.0
        %352 = vmatpush1.msra.mxu0 %v318
        %353 = vmatprep.subr.mxu0 0.0
        %354 = vmatpush1.msra.mxu0 %v319
        %355 = vmatprep.subr.mxu0 0.0
        %356 = vmatpush1.msra.mxu0 %v320
        %357 = vmatprep.subr.mxu0 0.0
        %358 = vmatpush1.msra.mxu0 %v321
        %359 = vmatprep.subr.mxu0 0.0
        %360 = vmatpush1.msra.mxu0 %v322
        %361 = vmatprep.subr.mxu0 0.0
        %362 = vmatpush1.msra.mxu0 %v323
        %363 = vmatprep.subr.mxu0 0.0
        %364 = vmatpush1.msra.mxu0 0.0
        %365 = vmatprep.subr.mxu0 0.0
        %366 = vmatpush1.msra.mxu0 0.0
        %367 = vmatprep.subr.mxu0 0.0
        %368 = vmatpush1.msra.mxu0 0.0
        %369 = vmatprep.subr.mxu0 0.0
        %370 = vmatpush1.msra.mxu0 0.0
        %371 = vmatprep.subr.mxu0 0.0
        %372 = vmatpush1.msra.mxu0 0.0
        %373 = vmatprep.subr.mxu0 0.0
        %374 = vmatpush1.msra.mxu0 0.0
        %375 = vmatprep.subr.mxu0 0.0
        %376 = vmatpush1.msra.mxu0 0.0
        %377 = vmatprep.subr.mxu0 0.0
        %378 = vmatpush1.msra.mxu0 0.0
        %379 = vmatprep.subr.mxu0 0.0
        %380 = vmatpush1.msra.mxu0 0.0
        %381 = vmatprep.subr.mxu0 0.0
        %382 = vmatpush1.msra.mxu0 0.0
        %383 = vmatprep.subr.mxu0 0.0
        %384 = vmatpush1.msra.mxu0 0.0
        %385 = vmatprep.subr.mxu0 0.0
        %386 = vmatpush1.msra.mxu0 0.0
        %387 = vmatprep.subr.mxu0 0.0
        %388 = vmatpush1.msra.mxu0 0.0
        %389 = vmatprep.subr.mxu0 0.0
        %390 = vmatpush1.msra.mxu0 0.0
        %391 = vmatprep.subr.mxu0 0.0
        %392 = vmatpush1.msra.mxu0 0.0
        %393 = vmatprep.subr.mxu0 0.0
        %394 = vmatpush1.msra.mxu0 0.0
        %395 = vmatprep.mubr.f32.mxu0 0.0
        %396 = vmatmul.mubr.f32.gmra.mrb[0].mxu0 %v307
        %v397 = vpop.f32.mrb[0].mxu0
        %v398 = vadd.f32 %v329, %v397
        %v399 = vpop.f32.mrb[0].mxu0
        %400 = vdwg.mxu0
        %v401 = vtanh.pop %v398
        %v402 = vld [vmem:[#allocation7] sm:$0xff]
        %v403 = vld [vmem:[#allocation7 + $0x8] sm:$0xff]
        %v404 = vld [vmem:[#allocation7 + $0x10] sm:$0xff]
        %v405 = vld [vmem:[#allocation7 + $0x18] sm:$0xff]
        %v406 = vld [vmem:[#allocation7 + $0x20] sm:$0xff]
        %v407 = vld [vmem:[#allocation7 + $0x28] sm:$0xff]
        %v408 = vld [vmem:[#allocation7 + $0x30] sm:$0xff]
        %v409 = vld [vmem:[#allocation7 + $0x38] sm:$0xff]
        %v410 = vld [vmem:[#allocation7 + $0x40] sm:$0xff]
        %v411 = vld [vmem:[#allocation7 + $0x48] sm:$0xff]
        %v412 = vld [vmem:[#allocation7 + $0x50] sm:$0xff]
        %v413 = vld [vmem:[#allocation7 + $0x58] sm:$0xff]
        %v414 = vld [vmem:[#allocation7 + $0x60] sm:$0xff]
        %v415 = vld [vmem:[#allocation7 + $0x68] sm:$0xff]
        %v416 = vld [vmem:[#allocation7 + $0x70] sm:$0xff]
        %v417 = vld [vmem:[#allocation7 + $0x78] sm:$0xff]
        %v418 = vld [vmem:[%s4] sm:$0x1]
        %v420 = vlaneseq
        %v421 = vshrl.u32 %v420, 7
        %v422 = vsub.s32 0, %v421
        %v423 = vrot.slane %v418, %v422
        %425 = vmatprep.subr.mxu0 0.0
        %426 = vmatpush1.msra.mxu0 %v402
        %427 = vmatprep.subr.mxu0 0.0
        %428 = vmatpush1.msra.mxu0 %v403
        %429 = vmatprep.subr.mxu0 0.0
        %430 = vmatpush1.msra.mxu0 %v404
        %431 = vmatprep.subr.mxu0 0.0
        %432 = vmatpush1.msra.mxu0 %v405
        %433 = vmatprep.subr.mxu0 0.0
        %434 = vmatpush1.msra.mxu0 %v406
        %435 = vmatprep.subr.mxu0 0.0
        %436 = vmatpush1.msra.mxu0 %v407
        %437 = vmatprep.subr.mxu0 0.0
        %438 = vmatpush1.msra.mxu0 %v408
        %439 = vmatprep.subr.mxu0 0.0
        %440 = vmatpush1.msra.mxu0 %v409
        %441 = vmatprep.subr.mxu0 0.0
        %442 = vmatpush1.msra.mxu0 %v410
        %443 = vmatprep.subr.mxu0 0.0
        %444 = vmatpush1.msra.mxu0 %v411
        %445 = vmatprep.subr.mxu0 0.0
        %446 = vmatpush1.msra.mxu0 %v412
        %447 = vmatprep.subr.mxu0 0.0
        %448 = vmatpush1.msra.mxu0 %v413
        %449 = vmatprep.subr.mxu0 0.0
        %450 = vmatpush1.msra.mxu0 %v414
        %451 = vmatprep.subr.mxu0 0.0
        %452 = vmatpush1.msra.mxu0 %v415
        %453 = vmatprep.subr.mxu0 0.0
        %454 = vmatpush1.msra.mxu0 %v416
        %455 = vmatprep.subr.mxu0 0.0
        %456 = vmatpush1.msra.mxu0 %v417
        %457 = vmatprep.subr.mxu0 0.0
        %458 = vmatpush1.msra.mxu0 0.0
        %459 = vmatprep.subr.mxu0 0.0
        %460 = vmatpush1.msra.mxu0 0.0
        %461 = vmatprep.subr.mxu0 0.0
        %462 = vmatpush1.msra.mxu0 0.0
        %463 = vmatprep.subr.mxu0 0.0
        %464 = vmatpush1.msra.mxu0 0.0
        %465 = vmatprep.subr.mxu0 0.0
        %466 = vmatpush1.msra.mxu0 0.0
        %467 = vmatprep.subr.mxu0 0.0
        %468 = vmatpush1.msra.mxu0 0.0
        %469 = vmatprep.subr.mxu0 0.0
        %470 = vmatpush1.msra.mxu0 0.0
        %471 = vmatprep.subr.mxu0 0.0
        %472 = vmatpush1.msra.mxu0 0.0
        %473 = vmatprep.subr.mxu0 0.0
        %474 = vmatpush1.msra.mxu0 0.0
        %475 = vmatprep.subr.mxu0 0.0
        %476 = vmatpush1.msra.mxu0 0.0
        %477 = vmatprep.subr.mxu0 0.0
        %478 = vmatpush1.msra.mxu0 0.0
        %479 = vmatprep.subr.mxu0 0.0
        %480 = vmatpush1.msra.mxu0 0.0
        %481 = vmatprep.subr.mxu0 0.0
        %482 = vmatpush1.msra.mxu0 0.0
        %483 = vmatprep.subr.mxu0 0.0
        %484 = vmatpush1.msra.mxu0 0.0
        %485 = vmatprep.subr.mxu0 0.0
        %486 = vmatpush1.msra.mxu0 0.0
        %487 = vmatprep.subr.mxu0 0.0
        %488 = vmatpush1.msra.mxu0 0.0
        %489 = vmatprep.mubr.f32.mxu0 0.0
        %490 = vmatmul.mubr.f32.gmra.mrb[0].mxu0 %v401
        %v491 = vpop.f32.mrb[0].mxu0
        %v492 = vadd.f32 %v423, %v491
        %v493 = vpop.f32.mrb[0].mxu0
        %494 = vdwg.mxu0
        %495 = vst [vmem:[%s296] sm:$0xff] %v492
        %496 = vadd.xlane.f32.xlu0 %v492
        %v497 = vpop.xlane.xlu0 %496
        %vm498 = vcmask 7168
        %499 = vst.msk [vmem:[%s306] sm:$0xff] %vm498, %v497
        %s500 = sand.u32 %s143, 1
        %s501 = scalar_lea.sflag [#allocation4], %s500
        %s502 = sand.u32 %s143, 1
        %s503 = smul.addr %s502, 8
        %s504 = scalar_lea.vmem [#allocation8], %s503
        %p505 = scmp.lt.s32.totalorder %s25, 1
        %s506 = scalar_select %p505, %s25, 1
        %s507 = smul.addr %s506, 8
        %s508 = scalar_lea.vmem %s6, %s507
        // Predicated region
        $region53: #{tpu_custom_call.1} parent=39 // pred_check
          %p509 = pneg %p153
        $region54: #{tpu_custom_call.1} parent=39 // pred_check_branch
          %511 = sbr.rel (%p509) target = $region56
        $region55: #{tpu_custom_call.1} parent=39 // pred_region
          %s513 = ssub.s32 128, 128
          %514 = vsyncadd %s501, %s513
          %s515 = smul.addr %s25, 128
          %s516 = scalar_lea.hbm %s5, %s515
          %s518 = sshll.u32 %s504, 4
          %s519 = int_to_ptr.vmem [resolvable:$true] %s518
          %521 = dma.vmem_to_hbm [thread:$0]  %s519, 128, %s516, %s501
        $region56: #{tpu_custom_call.1} parent=39 // pred_fallthru
          _
        // Predicated region
        $region57: #{tpu_custom_call.1} parent=39 // pred_check
          %p522 = pneg %p179
        $region58: #{tpu_custom_call.1} parent=39 // pred_check_branch
          %524 = sbr.rel (%p522) target = $region60
        $region59: #{tpu_custom_call.1} parent=39 // pred_region
          _
        $region60: #{tpu_custom_call.1} parent=39 // pred_fallthru
          _
      $region40: #{tpu_custom_call.1} parent=5 // pred_fallthru
        _
      %p525 = scmp.le.s32.totalorder 2, %s20
      // Predicated region
      $region61: #{tpu_custom_call.1} parent=5 // pred_check
        %p526 = pneg %p525
      $region62: #{tpu_custom_call.1} parent=5 // pred_check_branch
        %528 = sbr.rel (%p526) target = $region64
      $region63: #{tpu_custom_call.1} parent=5 // pred_region
        %s529 = ssub.s32 %s20, 2
        // Predicated region
        $region65: #{tpu_custom_call.1} parent=63 // pred_check
          %p530 = pneg %p159
        $region66: #{tpu_custom_call.1} parent=63 // pred_check_branch
          %532 = sbr.rel (%p530) target = $region68
        $region67: #{tpu_custom_call.1} parent=63 // pred_region
          %s533 = sand.u32 %s144, 1
          %s534 = scalar_lea.sflag [#allocation4], %s533
          %s535 = sand.u32 %s144, 1
          %s536 = smul.addr %s535, 8
          %s537 = scalar_lea.vmem [#allocation8], %s536
          %538 = dma.done %s534, 128
        $region68: #{tpu_custom_call.1} parent=63 // pred_fallthru
          _
        // Predicated region
        $region69: #{tpu_custom_call.1} parent=63 // pred_check
          %p539 = pneg %p185
        $region70: #{tpu_custom_call.1} parent=63 // pred_check_branch
          %541 = sbr.rel (%p539) target = $region72
        $region71: #{tpu_custom_call.1} parent=63 // pred_region
          %p542 = scmp.lt.s32.totalorder %s26, 1
          %s543 = scalar_select %p542, %s26, 1
          %s544 = smul.addr %s543, 8
          %s545 = scalar_lea.vmem %s6, %s544
        $region72: #{tpu_custom_call.1} parent=63 // pred_fallthru
          _
      $region64: #{tpu_custom_call.1} parent=5 // pred_fallthru
        _
    $region6: #{tpu_custom_call.1} parent=1 // loop_footer
      %s24 = sadd.s32 1, %s20
    $region7: #{tpu_custom_call.1} parent=1 // loop_footer_branch
      %19 = sbr.rel target = $region3
    $region8: #{tpu_custom_call.1} parent=1 // loop_exit
      _
    %546 = vsyncpa [#allocation3], 1
    %s547 = scalar_lea.sflag [#allocation3], 1
    %548 = vsyncpa %s547, 1
    %549 = vsyncpa [#allocation6], 1
    %550 = vsyncpa [#allocation4], 1
    %s551 = scalar_lea.sflag [#allocation4], 1
    %552 = vsyncpa %s551, 1

// kernel: tpu_custom_call.1
$region0: #{tpu_custom_call.1}
  #allocation0 [shape = 'u32[]', space=smem, size = 0x4, offset = 0x4, fixed_abs, tag = 'smem constant byte address 0x4 - core index']
  #allocation1 [shape = 'u32[144,128]{1,0:T(1,128)}', space=vmem, size = 0x12000, scoped, tag = 'internal scratch']
  %s0 = inlined_call_operand.hbm [shape: f32[12,128], index: 0, kind: input, shape index: {}]
  %s1 = inlined_call_operand.hbm [shape: f32[128,128], index: 1, kind: input, shape index: {}]
  %s2 = inlined_call_operand.vmem [shape: f32[1,128], index: 2, kind: input, shape index: {}]
  %s3 = inlined_call_operand.hbm [shape: f32[128,128], index: 3, kind: input, shape index: {}]
  %s4 = inlined_call_operand.vmem [shape: f32[1,128], index: 4, kind: input, shape index: {}]
  %s5 = inlined_call_operand.hbm [shape: f32[12,128], index: 5, kind: output, shape index: {0}]
  %s6 = inlined_call_operand.vmem [shape: f32[12,1], index: 6, kind: output, shape index: {1}]
  %7 = xla_tuple %s5, %s6
  %s8 = sld [smem:[#allocation0]]
  $region73: #{tpu_custom_call.1} parent=0
    _
  %s10 = ssub.s32 1, %s8
  %s11 = scalar_select 0, %s10, %s8
  $region1: #{tpu_custom_call.1} parent=0
    #allocation2 [shape = 'u8[8192]{0}', space=vmem, size = 0x2000, scoped, tag = 'input window, operand 0']
    #allocation3 [shape = 's32[2]{0}', space=sflag, size = 0x8, scoped, tag = 'scoped memory for tpu_custom_call.1']
    #allocation4 [shape = 's32[2]{0}', space=sflag, size = 0x8, scoped, tag = 'scoped memory for tpu_custom_call.1']
    #allocation5 [shape = 'u8[65536]{0}', space=vmem, size = 0x10000, scoped, tag = 'input window, operand 1, single buffered']
    #allocation6 [shape = 's32[1]{0}', space=sflag, size = 0x4, scoped, tag = 'scoped memory for tpu_custom_call.1']
    #allocation7 [shape = 'u8[65536]{0}', space=vmem, size = 0x10000, scoped, tag = 'input window, operand 3, single buffered']
    #allocation8 [shape = 'u8[8192]{0}', space=vmem, size = 0x2000, scoped, tag = 'output window, operand 0']
    %12 = vsyncpa [#allocation3], 0
    %s13 = scalar_lea.sflag [#allocation3], 1
    %14 = vsyncpa %s13, 0
    %15 = vsyncpa [#allocation6], 0
    %16 = vsyncpa [#allocation4], 0
    %s17 = scalar_lea.sflag [#allocation4], 1
    %18 = vsyncpa %s17, 0
    loop: start=0, step=1, limit=4
    $region2: #{tpu_custom_call.1} parent=1 // loop_pre_header
      _
    $region3: #{tpu_custom_call.1} parent=1 // loop_header
      %s20 = sphi 0, %s24
      %p21 = scmp.ge.s32.totalorder %s20, 4
      %s30 = sphi 0, %s32
      %s33 = sphi 0, %s30
      %s34 = sphi 0, %s33
      %s50 = sphi 0, %s34
      %s54 = sphi 0, %s54
      %s56 = sphi 0, %s54
      %s57 = sphi 0, %s56
      %s71 = sphi 0, %s57
      %s75 = sphi 0, %s75
      %s77 = sphi 0, %s75
      %s78 = sphi 0, %s77
      %s92 = sphi 0, %s78
      %s96 = sphi 0, %s96
      %s98 = sphi 0, %s96
      %s99 = sphi 0, %s98
      %s113 = sphi 0, %s99
      %s117 = sphi 0, %s117
      %s119 = sphi 0, %s117
      %s120 = sphi 0, %s119
      %s134 = sphi 0, %s120
      %s140 = sphi 0, %s142
      %s143 = sphi 0, %s140
      %s144 = sphi 0, %s143
      %s160 = sphi 0, %s144
      %s166 = sphi 0, %s168
      %s169 = sphi 0, %s166
      %s170 = sphi 0, %s169
      %s186 = sphi 0, %s170
    $region4: #{tpu_custom_call.1} parent=1 // loop_header_branch
      %23 = sbr.rel (%p21) target = $region8
    $region5: #{tpu_custom_call.1} parent=1 // loop_body
      %s25 = ssub.s32 %s20, 1
      %s26 = ssub.s32 %s20, 2
      %s27 = sadd.s32 %s20, 1
      %s28 = ssub.s32 %s20, %s27
      %p29 = scmp.eq.s32.totalorder %s28, 0
      %s31 = sadd.s32 %s30, 1
      %s32 = scalar_select %p29, %s30, %s31
      %p35 = pneg %p29
      %p36 = scmp.eq.s32.totalorder %s20, 1
      %p37 = por %p35, %p36
      %p38 = scmp.ne.s32.totalorder %s30, %s33
      %p39 = scmp.eq.s32.totalorder %s20, 0
      %p40 = por %p38, %p39
      %p41 = scmp.ne.s32.totalorder %s30, %s33
      %p42 = scmp.eq.s32.totalorder %s25, 1
      %p43 = por %p41, %p42
      %p44 = scmp.ne.s32.totalorder %s33, %s34
      %p45 = scmp.eq.s32.totalorder %s25, 0
      %p46 = por %p44, %p45
      %p47 = scmp.ne.s32.totalorder %s33, %s34
      %p48 = scmp.eq.s32.totalorder %s26, 1
      %p49 = por %p47, %p48
      %p51 = scmp.ne.s32.totalorder %s34, %s50
      %p52 = scmp.eq.s32.totalorder %s26, 0
      %p53 = por %p51, %p52
      %s55 = sadd.s32 %s54, 1
      %p58 = scmp.eq.s32.totalorder %s20, 1
      %p59 = scmp.ne.s32.totalorder %s54, %s56
      %p60 = scmp.eq.s32.totalorder %s20, 0
      %p61 = por %p59, %p60
      %p62 = scmp.ne.s32.totalorder %s54, %s56
      %p63 = scmp.eq.s32.totalorder %s25, 1
      %p64 = por %p62, %p63
      %p65 = scmp.ne.s32.totalorder %s56, %s57
      %p66 = scmp.eq.s32.totalorder %s25, 0
      %p67 = por %p65, %p66
      %p68 = scmp.ne.s32.totalorder %s56, %s57
      %p69 = scmp.eq.s32.totalorder %s26, 1
      %p70 = por %p68, %p69
      %p72 = scmp.ne.s32.totalorder %s57, %s71
      %p73 = scmp.eq.s32.totalorder %s26, 0
      %p74 = por %p72, %p73
      %s76 = sadd.s32 %s75, 1
      %p79 = scmp.eq.s32.totalorder %s20, 1
      %p80 = scmp.ne.s32.totalorder %s75, %s77
      %p81 = scmp.eq.s32.totalorder %s20, 0
      %p82 = por %p80, %p81
      %p83 = scmp.ne.s32.totalorder %s75, %s77
      %p84 = scmp.eq.s32.totalorder %s25, 1
      %p85 = por %p83, %p84
      %p86 = scmp.ne.s32.totalorder %s77, %s78
      %p87 = scmp.eq.s32.totalorder %s25, 0
      %p88 = por %p86, %p87
      %p89 = scmp.ne.s32.totalorder %s77, %s78
      %p90 = scmp.eq.s32.totalorder %s26, 1
      %p91 = por %p89, %p90
      %p93 = scmp.ne.s32.totalorder %s78, %s92
      %p94 = scmp.eq.s32.totalorder %s26, 0
      %p95 = por %p93, %p94
      %s97 = sadd.s32 %s96, 1
      %p100 = scmp.eq.s32.totalorder %s20, 1
      %p101 = scmp.ne.s32.totalorder %s96, %s98
      %p102 = scmp.eq.s32.totalorder %s20, 0
      %p103 = por %p101, %p102
      %p104 = scmp.ne.s32.totalorder %s96, %s98
      %p105 = scmp.eq.s32.totalorder %s25, 1
      %p106 = por %p104, %p105
      %p107 = scmp.ne.s32.totalorder %s98, %s99
      %p108 = scmp.eq.s32.totalorder %s25, 0
      %p109 = por %p107, %p108
      %p110 = scmp.ne.s32.totalorder %s98, %s99
      %p111 = scmp.eq.s32.totalorder %s26, 1
      %p112 = por %p110, %p111
      %p114 = scmp.ne.s32.totalorder %s99, %s113
      %p115 = scmp.eq.s32.totalorder %s26, 0
      %p116 = por %p114, %p115
      %s118 = sadd.s32 %s117, 1
      %p121 = scmp.eq.s32.totalorder %s20, 1
      %p122 = scmp.ne.s32.totalorder %s117, %s119
      %p123 = scmp.eq.s32.totalorder %s20, 0
      %p124 = por %p122, %p123
      %p125 = scmp.ne.s32.totalorder %s117, %s119
      %p126 = scmp.eq.s32.totalorder %s25, 1
      %p127 = por %p125, %p126
      %p128 = scmp.ne.s32.totalorder %s119, %s120
      %p129 = scmp.eq.s32.totalorder %s25, 0
      %p130 = por %p128, %p129
      %p131 = scmp.ne.s32.totalorder %s119, %s120
      %p132 = scmp.eq.s32.totalorder %s26, 1
      %p133 = por %p131, %p132
      %p135 = scmp.ne.s32.totalorder %s120, %s134
      %p136 = scmp.eq.s32.totalorder %s26, 0
      %p137 = por %p135, %p136
      %s138 = ssub.s32 %s20, %s27
      %p139 = scmp.eq.s32.totalorder %s138, 0
      %s141 = sadd.s32 %s140, 1
      %s142 = scalar_select %p139, %s140, %s141
      %p145 = pneg %p139
      %p146 = scmp.eq.s32.totalorder %s20, 1
      %p147 = por %p145, %p146
      %p148 = scmp.ne.s32.totalorder %s140, %s143
      %p149 = scmp.eq.s32.totalorder %s20, 0
      %p150 = por %p148, %p149
      %p151 = scmp.ne.s32.totalorder %s140, %s143
      %p152 = scmp.eq.s32.totalorder %s25, 1
      %p153 = por %p151, %p152
      %p154 = scmp.ne.s32.totalorder %s143, %s144
      %p155 = scmp.eq.s32.totalorder %s25, 0
      %p156 = por %p154, %p155
      %p157 = scmp.ne.s32.totalorder %s143, %s144
      %p158 = scmp.eq.s32.totalorder %s26, 1
      %p159 = por %p157, %p158
      %p161 = scmp.ne.s32.totalorder %s144, %s160
      %p162 = scmp.eq.s32.totalorder %s26, 0
      %p163 = por %p161, %p162
      %s164 = ssub.s32 %s20, %s27
      %p165 = scmp.eq.s32.totalorder %s164, 0
      %s167 = sadd.s32 %s166, 1
      %s168 = scalar_select %p165, %s166, %s167
      %p171 = pneg %p165
      %p172 = scmp.eq.s32.totalorder %s20, 1
      %p173 = por %p171, %p172
      %p174 = scmp.ne.s32.totalorder %s166, %s169
      %p175 = scmp.eq.s32.totalorder %s20, 0
      %p176 = por %p174, %p175
      %p177 = scmp.ne.s32.totalorder %s166, %s169
      %p178 = scmp.eq.s32.totalorder %s25, 1
      %p179 = por %p177, %p178
      %p180 = scmp.ne.s32.totalorder %s169, %s170
      %p181 = scmp.eq.s32.totalorder %s25, 0
      %p182 = por %p180, %p181
      %p183 = scmp.ne.s32.totalorder %s169, %s170
      %p184 = scmp.eq.s32.totalorder %s26, 1
      %p185 = por %p183, %p184
      %p187 = scmp.ne.s32.totalorder %s170, %s186
      %p188 = scmp.eq.s32.totalorder %s26, 0
      %p189 = por %p187, %p188
      %p190 = scmp.le.s32.totalorder 1, %s20
      %p191 = scmp.lt.s32.totalorder %s20, 3
      %p192 = pnand %p190, %p191
      %p193 = pneg %p192
      // Predicated region
      $region9: #{tpu_custom_call.1} parent=5 // pred_check
        _
      $region10: #{tpu_custom_call.1} parent=5 // pred_check_branch
        %195 = sbr.rel (%p192) target = $region12
      $region11: #{tpu_custom_call.1} parent=5 // pred_region
        %s196 = ssub.s32 %s20, 1
        // Predicated region
        $region13: #{tpu_custom_call.1} parent=11 // pred_check
          %p197 = pneg %p67
        $region14: #{tpu_custom_call.1} parent=11 // pred_check_branch
          %199 = sbr.rel (%p197) target = $region16
        $region15: #{tpu_custom_call.1} parent=11 // pred_region
          %s201 = ssub.s32 2048, 2048
          %202 = vsyncadd [#allocation6], %s201
          %s203 = sshll.u32 [#allocation5], 4
          %s204 = int_to_ptr.vmem [resolvable:$true] %s203
          %209 = dma.hbm_to_vmem [thread:$0]  %s1, 2048, %s204, [#allocation6], 128, 128, 8
        $region16: #{tpu_custom_call.1} parent=11 // pred_fallthru
          _
        // Predicated region
        $region17: #{tpu_custom_call.1} parent=11 // pred_check
          %p210 = pneg %p88
        $region18: #{tpu_custom_call.1} parent=11 // pred_check_branch
          %212 = sbr.rel (%p210) target = $region20
        $region19: #{tpu_custom_call.1} parent=11 // pred_region
          _
        $region20: #{tpu_custom_call.1} parent=11 // pred_fallthru
          _
        // Predicated region
        $region21: #{tpu_custom_call.1} parent=11 // pred_check
          %p213 = pneg %p109
        $region22: #{tpu_custom_call.1} parent=11 // pred_check_branch
          %215 = sbr.rel (%p213) target = $region24
        $region23: #{tpu_custom_call.1} parent=11 // pred_region
          %s217 = ssub.s32 2048, 2048
          %218 = vsyncadd [#allocation6], %s217
          %s219 = sshll.u32 [#allocation7], 4
          %s220 = int_to_ptr.vmem [resolvable:$true] %s219
          %225 = dma.hbm_to_vmem [thread:$0]  %s3, 2048, %s220, [#allocation6], 128, 128, 8
        $region24: #{tpu_custom_call.1} parent=11 // pred_fallthru
          _
        // Predicated region
        $region25: #{tpu_custom_call.1} parent=11 // pred_check
          %p226 = pneg %p130
        $region26: #{tpu_custom_call.1} parent=11 // pred_check_branch
          %228 = sbr.rel (%p226) target = $region28
        $region27: #{tpu_custom_call.1} parent=11 // pred_region
          _
        $region28: #{tpu_custom_call.1} parent=11 // pred_fallthru
          _
      $region12: #{tpu_custom_call.1} parent=5 // pred_fallthru
        _
      %p229 = scmp.lt.s32.totalorder %s20, 2
      // Predicated region
      $region29: #{tpu_custom_call.1} parent=5 // pred_check
        %p230 = pneg %p229
      $region30: #{tpu_custom_call.1} parent=5 // pred_check_branch
        %232 = sbr.rel (%p230) target = $region32
      $region31: #{tpu_custom_call.1} parent=5 // pred_region
        // Predicated region
        $region33: #{tpu_custom_call.1} parent=31 // pred_check
          %p233 = pneg %p40
        $region34: #{tpu_custom_call.1} parent=31 // pred_check_branch
          %235 = sbr.rel (%p233) target = $region36
        $region35: #{tpu_custom_call.1} parent=31 // pred_region
          %s236 = sand.u32 %s30, 1
          %s237 = scalar_lea.sflag [#allocation3], %s236
          %s238 = sand.u32 %s30, 1
          %s239 = smul.addr %s238, 8
          %s240 = scalar_lea.vmem [#allocation2], %s239
          %s242 = ssub.s32 128, 128
          %243 = vsyncadd %s237, %s242
          %s244 = smul.addr %s20, 128
          %s245 = scalar_lea.hbm %s0, %s244
          %s247 = sshll.u32 %s240, 4
          %s248 = int_to_ptr.vmem [resolvable:$true] %s247
          %250 = dma.hbm_to_vmem [thread:$0]  %s245, 128, %s248, %s237
        $region36: #{tpu_custom_call.1} parent=31 // pred_fallthru
          _
      $region32: #{tpu_custom_call.1} parent=5 // pred_fallthru
        _
      %p251 = scmp.le.s32.totalorder 1, %s20
      %p252 = scmp.lt.s32.totalorder %s20, 3
      %p253 = pnand %p251, %p252
      %p254 = pneg %p253
      // Predicated region
      $region37: #{tpu_custom_call.1} parent=5 // pred_check
        _
      $region38: #{tpu_custom_call.1} parent=5 // pred_check_branch
        %256 = sbr.rel (%p253) target = $region40
      $region39: #{tpu_custom_call.1} parent=5 // pred_region
        %s257 = ssub.s32 %s20, 1
        %s258 = sand.u32 %s33, 1
        %s259 = scalar_lea.sflag [#allocation3], %s258
        %s260 = sand.u32 %s33, 1
        %s261 = smul.addr %s260, 8
        %s262 = scalar_lea.vmem [#allocation2], %s261
        // Predicated region
        $region41: #{tpu_custom_call.1} parent=39 // pred_check
          %p263 = pneg %p46
        $region42: #{tpu_custom_call.1} parent=39 // pred_check_branch
          %265 = sbr.rel (%p263) target = $region44
        $region43: #{tpu_custom_call.1} parent=39 // pred_region
          %266 = dma.done %s259, 128
        $region44: #{tpu_custom_call.1} parent=39 // pred_fallthru
          _
        // Predicated region
        $region45: #{tpu_custom_call.1} parent=39 // pred_check
          %p267 = pneg %p67
        $region46: #{tpu_custom_call.1} parent=39 // pred_check_branch
          %269 = sbr.rel (%p267) target = $region48
        $region47: #{tpu_custom_call.1} parent=39 // pred_region
          %270 = dma.done [#allocation6], 2048
        $region48: #{tpu_custom_call.1} parent=39 // pred_fallthru
          _
        // Predicated region
        $region49: #{tpu_custom_call.1} parent=39 // pred_check
          %p271 = pneg %p109
        $region50: #{tpu_custom_call.1} parent=39 // pred_check_branch
          %273 = sbr.rel (%p271) target = $region52
        $region51: #{tpu_custom_call.1} parent=39 // pred_region
          %274 = dma.done [#allocation6], 2048
        $region52: #{tpu_custom_call.1} parent=39 // pred_fallthru
          _
        %s275 = sand.u32 %s33, 1
        %s276 = scalar_lea.sflag [#allocation3], %s275
        %s277 = sand.u32 %s33, 1
        %s278 = smul.addr %s277, 8
        %s279 = scalar_lea.vmem [#allocation2], %s278
        %p280 = pneg %p46
        %p281 = pneg %p43
        %p282 = pneg %p67
        %p283 = pneg %p64
        %p284 = pneg %p88
        %p285 = pneg %p85
        %p286 = pneg %p109
        %p287 = pneg %p106
        %p288 = pneg %p130
        %p289 = pneg %p127
        %p290 = pneg %p156
        %p291 = pneg %p153
        %s292 = sand.u32 %s143, 1
        %s293 = scalar_lea.sflag [#allocation4], %s292
        %s294 = sand.u32 %s143, 1
        %s295 = smul.addr %s294, 8
        %s296 = scalar_lea.vmem [#allocation8], %s295
        %p297 = pneg %p182
        %p298 = pneg %p179
        %p299 = scmp.lt.s32.totalorder %s25, 1
        %s300 = scalar_select %p299, %s25, 1
        %s301 = smul.addr %s300, 8
        %s302 = scalar_lea.vmem %s6, %s301
        %p303 = scmp.lt.s32.totalorder %s25, 1
        %s304 = scalar_select %p303, %s25, 1
        %s305 = smul.addr %s304, 8
        %s306 = scalar_lea.vmem %s6, %s305
        %v307 = vld [vmem:[%s262] sm:$0xff]
        %v308 = vld [vmem:[#allocation5] sm:$0xff]
        %v309 = vld [vmem:[#allocation5 + $0x8] sm:$0xff]
        %v310 = vld [vmem:[#allocation5 + $0x10] sm:$0xff]
        %v311 = vld [vmem:[#allocation5 + $0x18] sm:$0xff]
        %v312 = vld [vmem:[#allocation5 + $0x20] sm:$0xff]
        %v313 = vld [vmem:[#allocation5 + $0x28] sm:$0xff]
        %v314 = vld [vmem:[#allocation5 + $0x30] sm:$0xff]
        %v315 = vld [vmem:[#allocation5 + $0x38] sm:$0xff]
        %v316 = vld [vmem:[#allocation5 + $0x40] sm:$0xff]
        %v317 = vld [vmem:[#allocation5 + $0x48] sm:$0xff]
        %v318 = vld [vmem:[#allocation5 + $0x50] sm:$0xff]
        %v319 = vld [vmem:[#allocation5 + $0x58] sm:$0xff]
        %v320 = vld [vmem:[#allocation5 + $0x60] sm:$0xff]
        %v321 = vld [vmem:[#allocation5 + $0x68] sm:$0xff]
        %v322 = vld [vmem:[#allocation5 + $0x70] sm:$0xff]
        %v323 = vld [vmem:[#allocation5 + $0x78] sm:$0xff]
        %v324 = vld [vmem:[%s2] sm:$0x1]
        %v326 = vlaneseq
        %v327 = vshrl.u32 %v326, 7
        %v328 = vsub.s32 0, %v327
        %v329 = vrot.slane %v324, %v328
        %331 = vmatprep.subr.mxu0 0.0
        %332 = vmatpush1.msra.mxu0 %v308
        %333 = vmatprep.subr.mxu0 0.0
        %334 = vmatpush1.msra.mxu0 %v309
        %335 = vmatprep.subr.mxu0 0.0
        %336 = vmatpush1.msra.mxu0 %v310
        %337 = vmatprep.subr.mxu0 0.0
        %338 = vmatpush1.msra.mxu0 %v311
        %339 = vmatprep.subr.mxu0 0.0
        %340 = vmatpush1.msra.mxu0 %v312
        %341 = vmatprep.subr.mxu0 0.0
        %342 = vmatpush1.msra.mxu0 %v313
        %343 = vmatprep.subr.mxu0 0.0
        %344 = vmatpush1.msra.mxu0 %v314
        %345 = vmatprep.subr.mxu0 0.0
        %346 = vmatpush1.msra.mxu0 %v315
        %347 = vmatprep.subr.mxu0 0.0
        %348 = vmatpush1.msra.mxu0 %v316
        %349 = vmatprep.subr.mxu0 0.0
        %350 = vmatpush1.msra.mxu0 %v317
        %351 = vmatprep.subr.mxu0 0.0
        %352 = vmatpush1.msra.mxu0 %v318
        %353 = vmatprep.subr.mxu0 0.0
        %354 = vmatpush1.msra.mxu0 %v319
        %355 = vmatprep.subr.mxu0 0.0
        %356 = vmatpush1.msra.mxu0 %v320
        %357 = vmatprep.subr.mxu0 0.0
        %358 = vmatpush1.msra.mxu0 %v321
        %359 = vmatprep.subr.mxu0 0.0
        %360 = vmatpush1.msra.mxu0 %v322
        %361 = vmatprep.subr.mxu0 0.0
        %362 = vmatpush1.msra.mxu0 %v323
        %363 = vmatprep.subr.mxu0 0.0
        %364 = vmatpush1.msra.mxu0 0.0
        %365 = vmatprep.subr.mxu0 0.0
        %366 = vmatpush1.msra.mxu0 0.0
        %367 = vmatprep.subr.mxu0 0.0
        %368 = vmatpush1.msra.mxu0 0.0
        %369 = vmatprep.subr.mxu0 0.0
        %370 = vmatpush1.msra.mxu0 0.0
        %371 = vmatprep.subr.mxu0 0.0
        %372 = vmatpush1.msra.mxu0 0.0
        %373 = vmatprep.subr.mxu0 0.0
        %374 = vmatpush1.msra.mxu0 0.0
        %375 = vmatprep.subr.mxu0 0.0
        %376 = vmatpush1.msra.mxu0 0.0
        %377 = vmatprep.subr.mxu0 0.0
        %378 = vmatpush1.msra.mxu0 0.0
        %379 = vmatprep.subr.mxu0 0.0
        %380 = vmatpush1.msra.mxu0 0.0
        %381 = vmatprep.subr.mxu0 0.0
        %382 = vmatpush1.msra.mxu0 0.0
        %383 = vmatprep.subr.mxu0 0.0
        %384 = vmatpush1.msra.mxu0 0.0
        %385 = vmatprep.subr.mxu0 0.0
        %386 = vmatpush1.msra.mxu0 0.0
        %387 = vmatprep.subr.mxu0 0.0
        %388 = vmatpush1.msra.mxu0 0.0
        %389 = vmatprep.subr.mxu0 0.0
        %390 = vmatpush1.msra.mxu0 0.0
        %391 = vmatprep.subr.mxu0 0.0
        %392 = vmatpush1.msra.mxu0 0.0
        %393 = vmatprep.subr.mxu0 0.0
        %394 = vmatpush1.msra.mxu0 0.0
        %395 = vmatprep.mubr.f32.mxu0 0.0
        %396 = vmatmul.mubr.f32.gmra.mrb[0].mxu0 %v307
        %v397 = vpop.f32.mrb[0].mxu0
        %v398 = vadd.f32 %v329, %v397
        %v399 = vpop.f32.mrb[0].mxu0
        %400 = vdwg.mxu0
        %v401 = vtanh.pop %v398
        %v402 = vld [vmem:[#allocation7] sm:$0xff]
        %v403 = vld [vmem:[#allocation7 + $0x8] sm:$0xff]
        %v404 = vld [vmem:[#allocation7 + $0x10] sm:$0xff]
        %v405 = vld [vmem:[#allocation7 + $0x18] sm:$0xff]
        %v406 = vld [vmem:[#allocation7 + $0x20] sm:$0xff]
        %v407 = vld [vmem:[#allocation7 + $0x28] sm:$0xff]
        %v408 = vld [vmem:[#allocation7 + $0x30] sm:$0xff]
        %v409 = vld [vmem:[#allocation7 + $0x38] sm:$0xff]
        %v410 = vld [vmem:[#allocation7 + $0x40] sm:$0xff]
        %v411 = vld [vmem:[#allocation7 + $0x48] sm:$0xff]
        %v412 = vld [vmem:[#allocation7 + $0x50] sm:$0xff]
        %v413 = vld [vmem:[#allocation7 + $0x58] sm:$0xff]
        %v414 = vld [vmem:[#allocation7 + $0x60] sm:$0xff]
        %v415 = vld [vmem:[#allocation7 + $0x68] sm:$0xff]
        %v416 = vld [vmem:[#allocation7 + $0x70] sm:$0xff]
        %v417 = vld [vmem:[#allocation7 + $0x78] sm:$0xff]
        %v418 = vld [vmem:[%s4] sm:$0x1]
        %v420 = vlaneseq
        %v421 = vshrl.u32 %v420, 7
        %v422 = vsub.s32 0, %v421
        %v423 = vrot.slane %v418, %v422
        %425 = vmatprep.subr.mxu0 0.0
        %426 = vmatpush1.msra.mxu0 %v402
        %427 = vmatprep.subr.mxu0 0.0
        %428 = vmatpush1.msra.mxu0 %v403
        %429 = vmatprep.subr.mxu0 0.0
        %430 = vmatpush1.msra.mxu0 %v404
        %431 = vmatprep.subr.mxu0 0.0
        %432 = vmatpush1.msra.mxu0 %v405
        %433 = vmatprep.subr.mxu0 0.0
        %434 = vmatpush1.msra.mxu0 %v406
        %435 = vmatprep.subr.mxu0 0.0
        %436 = vmatpush1.msra.mxu0 %v407
        %437 = vmatprep.subr.mxu0 0.0
        %438 = vmatpush1.msra.mxu0 %v408
        %439 = vmatprep.subr.mxu0 0.0
        %440 = vmatpush1.msra.mxu0 %v409
        %441 = vmatprep.subr.mxu0 0.0
        %442 = vmatpush1.msra.mxu0 %v410
        %443 = vmatprep.subr.mxu0 0.0
        %444 = vmatpush1.msra.mxu0 %v411
        %445 = vmatprep.subr.mxu0 0.0
        %446 = vmatpush1.msra.mxu0 %v412
        %447 = vmatprep.subr.mxu0 0.0
        %448 = vmatpush1.msra.mxu0 %v413
        %449 = vmatprep.subr.mxu0 0.0
        %450 = vmatpush1.msra.mxu0 %v414
        %451 = vmatprep.subr.mxu0 0.0
        %452 = vmatpush1.msra.mxu0 %v415
        %453 = vmatprep.subr.mxu0 0.0
        %454 = vmatpush1.msra.mxu0 %v416
        %455 = vmatprep.subr.mxu0 0.0
        %456 = vmatpush1.msra.mxu0 %v417
        %457 = vmatprep.subr.mxu0 0.0
        %458 = vmatpush1.msra.mxu0 0.0
        %459 = vmatprep.subr.mxu0 0.0
        %460 = vmatpush1.msra.mxu0 0.0
        %461 = vmatprep.subr.mxu0 0.0
        %462 = vmatpush1.msra.mxu0 0.0
        %463 = vmatprep.subr.mxu0 0.0
        %464 = vmatpush1.msra.mxu0 0.0
        %465 = vmatprep.subr.mxu0 0.0
        %466 = vmatpush1.msra.mxu0 0.0
        %467 = vmatprep.subr.mxu0 0.0
        %468 = vmatpush1.msra.mxu0 0.0
        %469 = vmatprep.subr.mxu0 0.0
        %470 = vmatpush1.msra.mxu0 0.0
        %471 = vmatprep.subr.mxu0 0.0
        %472 = vmatpush1.msra.mxu0 0.0
        %473 = vmatprep.subr.mxu0 0.0
        %474 = vmatpush1.msra.mxu0 0.0
        %475 = vmatprep.subr.mxu0 0.0
        %476 = vmatpush1.msra.mxu0 0.0
        %477 = vmatprep.subr.mxu0 0.0
        %478 = vmatpush1.msra.mxu0 0.0
        %479 = vmatprep.subr.mxu0 0.0
        %480 = vmatpush1.msra.mxu0 0.0
        %481 = vmatprep.subr.mxu0 0.0
        %482 = vmatpush1.msra.mxu0 0.0
        %483 = vmatprep.subr.mxu0 0.0
        %484 = vmatpush1.msra.mxu0 0.0
        %485 = vmatprep.subr.mxu0 0.0
        %486 = vmatpush1.msra.mxu0 0.0
        %487 = vmatprep.subr.mxu0 0.0
        %488 = vmatpush1.msra.mxu0 0.0
        %489 = vmatprep.mubr.f32.mxu0 0.0
        %490 = vmatmul.mubr.f32.gmra.mrb[0].mxu0 %v401
        %v491 = vpop.f32.mrb[0].mxu0
        %v492 = vadd.f32 %v423, %v491
        %v493 = vpop.f32.mrb[0].mxu0
        %494 = vdwg.mxu0
        %495 = vst [vmem:[%s296] sm:$0xff] %v492
        %496 = vadd.xlane.f32.xlu0 %v492
        %v497 = vpop.xlane.xlu0 %496
        %vm498 = vcmask 7168
        %499 = vst.msk [vmem:[%s306] sm:$0xff] %vm498, %v497
        %s500 = sand.u32 %s143, 1
        %s501 = scalar_lea.sflag [#allocation4], %s500
        %s502 = sand.u32 %s143, 1
        %s503 = smul.addr %s502, 8
        %s504 = scalar_lea.vmem [#allocation8], %s503
        %p505 = scmp.lt.s32.totalorder %s25, 1
        %s506 = scalar_select %p505, %s25, 1
        %s507 = smul.addr %s506, 8
        %s508 = scalar_lea.vmem %s6, %s507
        // Predicated region
        $region53: #{tpu_custom_call.1} parent=39 // pred_check
          %p509 = pneg %p153
        $region54: #{tpu_custom_call.1} parent=39 // pred_check_branch
          %511 = sbr.rel (%p509) target = $region56
        $region55: #{tpu_custom_call.1} parent=39 // pred_region
          %s513 = ssub.s32 128, 128
          %514 = vsyncadd %s501, %s513
          %s515 = smul.addr %s25, 128
          %s516 = scalar_lea.hbm %s5, %s515
          %s518 = sshll.u32 %s504, 4
          %s519 = int_to_ptr.vmem [resolvable:$true] %s518
          %521 = dma.vmem_to_hbm [thread:$0]  %s519, 128, %s516, %s501
        $region56: #{tpu_custom_call.1} parent=39 // pred_fallthru
          _
        // Predicated region
        $region57: #{tpu_custom_call.1} parent=39 // pred_check
          %p522 = pneg %p179
        $region58: #{tpu_custom_call.1} parent=39 // pred_check_branch
          %524 = sbr.rel (%p522) target = $region60
        $region59: #{tpu_custom_call.1} parent=39 // pred_region
          _
        $region60: #{tpu_custom_call.1} parent=39 // pred_fallthru
          _
      $region40: #{tpu_custom_call.1} parent=5 // pred_fallthru
        _
      %p525 = scmp.le.s32.totalorder 2, %s20
      // Predicated region
      $region61: #{tpu_custom_call.1} parent=5 // pred_check
        %p526 = pneg %p525
      $region62: #{tpu_custom_call.1} parent=5 // pred_check_branch
        %528 = sbr.rel (%p526) target = $region64
      $region63: #{tpu_custom_call.1} parent=5 // pred_region
        %s529 = ssub.s32 %s20, 2
        // Predicated region
        $region65: #{tpu_custom_call.1} parent=63 // pred_check
          %p530 = pneg %p159
        $region66: #{tpu_custom_call.1} parent=63 // pred_check_branch
          %532 = sbr.rel (%p530) target = $region68
        $region67: #{tpu_custom_call.1} parent=63 // pred_region
          %s533 = sand.u32 %s144, 1
          %s534 = scalar_lea.sflag [#allocation4], %s533
          %s535 = sand.u32 %s144, 1
          %s536 = smul.addr %s535, 8
          %s537 = scalar_lea.vmem [#allocation8], %s536
          %538 = dma.done %s534, 128
        $region68: #{tpu_custom_call.1} parent=63 // pred_fallthru
          _
        // Predicated region
        $region69: #{tpu_custom_call.1} parent=63 // pred_check
          %p539 = pneg %p185
        $region70: #{tpu_custom_call.1} parent=63 // pred_check_branch
          %541 = sbr.rel (%p539) target = $region72
        $region71: #{tpu_custom_call.1} parent=63 // pred_region
          %p542 = scmp.lt.s32.totalorder %s26, 1
          %s543 = scalar_select %p542, %s26, 1
          %s544 = smul.addr %s543, 8
          %s545 = scalar_lea.vmem %s6, %s544
        $region72: #{tpu_custom_call.1} parent=63 // pred_fallthru
          _
      $region64: #{tpu_custom_call.1} parent=5 // pred_fallthru
        _
    $region6: #{tpu_custom_call.1} parent=1 // loop_footer
      %s24 = sadd.s32 1, %s20
    $region7: #{tpu_custom_call.1} parent=1 // loop_footer_branch
      %19 = sbr.rel target = $region3
    $region8: #{tpu_custom_call.1} parent=1 // loop_exit
      _
    %546 = vsyncpa [#allocation3], 1
    %s547 = scalar_lea.sflag [#allocation3], 1
    %548 = vsyncpa %s547, 1
    %549 = vsyncpa [#allocation6], 1
    %550 = vsyncpa [#allocation4], 1
    %s551 = scalar_lea.sflag [#allocation4], 1
    %552 = vsyncpa %s551, 1

</llo_original>
